<compile_context>
chip_gen: v7x
topology: tpu7x:2x2x1
jax: 0.10.0
libtpu: 0.0.40
codegen_flags: <defaults>
</compile_context>

<pallas_src>
import functools

import jax
import jax.numpy as jnp
from jax.experimental import pallas as pl
from jax.experimental.pallas import tpu as pltpu


# ---------------------------------------------------------------------------
# Kernels
# ---------------------------------------------------------------------------
def _ce_rowblock_kernel(pred_ref, tgt_ref, out_ref, *, n_valid):
    """One (tn, C) row block (full class dim) -> one partial NLL sum."""
    i = pl.program_id(0)

    logits = pred_ref[...]                                   # (tn, C) native dtype
    tgt = tgt_ref[...]                                       # (tn, 1) int32
    tn = logits.shape[0]

    # Row max in the native dtype (exact for bf16; avoids an f32 copy of the tile).
    m = jnp.max(logits, axis=-1, keepdims=True).astype(jnp.float32)   # (tn, 1)

    # Fused cast-subtract; `shifted` is the only live (tn, C) f32 temporary.
    shifted = logits.astype(jnp.float32) - m
    lse = m + jnp.log(jnp.sum(jnp.exp(shifted), axis=-1, keepdims=True))

    # Target pick via one-hot select on the native-dtype tile (exact: selects
    # original values; exactly one nonzero per row in the sum).
    col = jax.lax.broadcasted_iota(jnp.int32, logits.shape, 1)
    picked = jnp.sum(jnp.where(col == tgt, logits, jnp.zeros_like(logits)),
                     axis=-1, keepdims=True).astype(jnp.float32)

    per_row = lse - picked                                   # (tn, 1) NLL

    last = pl.num_programs(0) - 1

    @pl.when(i != last)
    def _():
        out_ref[0, 0] = jnp.sum(per_row)

    @pl.when(i == last)
    def _():
        # Only the last block can be partial.  where-select so NaN/Inf from
        # garbage tail rows can never leak into the sum.
        row_ids = i * tn + jax.lax.broadcasted_iota(jnp.int32, (tn, 1), 0)
        out_ref[0, 0] = jnp.sum(jnp.where(row_ids < n_valid, per_row, 0.0))


def _ce_colblock_kernel(pred_ref, tgt_ref, out_ref, m_sc, l_sc, p_sc, *, n_valid):
    """Column-tiled online-LSE variant for vocab-scale class counts."""
    i = pl.program_id(0)           # row block   ("parallel")
    j = pl.program_id(1)           # col block   ("arbitrary", reduction, last axis)

    @pl.when(j == 0)
    def _():
        m_sc[...] = jnp.full(m_sc.shape, -jnp.inf, dtype=jnp.float32)
        l_sc[...] = jnp.zeros(l_sc.shape, dtype=jnp.float32)
        p_sc[...] = jnp.zeros(p_sc.shape, dtype=jnp.float32)

    logits = pred_ref[...]                                   # (tn, tc) native dtype
    tgt = tgt_ref[...]                                       # (tn, 1) int32
    tn, tc = logits.shape

    m_prev = m_sc[...]
    m_new = jnp.maximum(
        m_prev, jnp.max(logits, axis=-1, keepdims=True).astype(jnp.float32))
    shifted = logits.astype(jnp.float32) - m_new             # single live f32 temp
    l_sc[...] = (l_sc[...] * jnp.exp(m_prev - m_new)
                 + jnp.sum(jnp.exp(shifted), axis=-1, keepdims=True))
    m_sc[...] = m_new

    # Accumulate the target logit if it falls inside this column block.
    col = j * tc + jax.lax.broadcasted_iota(jnp.int32, logits.shape, 1)
    p_sc[...] += jnp.sum(jnp.where(col == tgt, logits, jnp.zeros_like(logits)),
                         axis=-1, keepdims=True).astype(jnp.float32)

    @pl.when(j == pl.num_programs(1) - 1)
    def _():
        per_row = m_sc[...] + jnp.log(l_sc[...]) - p_sc[...]
        row_ids = i * tn + jax.lax.broadcasted_iota(jnp.int32, (tn, 1), 0)
        out_ref[0, 0] = jnp.sum(jnp.where(row_ids < n_valid, per_row, 0.0))


# ---------------------------------------------------------------------------
# Generation-aware tiling heuristics
# ---------------------------------------------------------------------------
def _vmem_budgets():
    """(block budget bytes, vmem_limit_bytes) derived from physical VMEM."""
    phys = 64 * 1024 * 1024                      # conservative default (v7x per-TC)
    try:
        info = pltpu.get_tpu_info()
        cap = getattr(info, "vmem_capacity_bytes", None)
        if cap:
            phys = int(cap)
    except Exception:
        pass
    if phys >= 128 * 1024 * 1024:                # v5e / v6e: 128 MiB physical
        return 80 * 1024 * 1024, 104 * 1024 * 1024
    return 32 * 1024 * 1024, 48 * 1024 * 1024    # v7x (64 MiB) or unknown


def _pick_block_rows(n_rows, n_cols, itemsize, budget_bytes, row_cap=2048):
    """Largest row tile keeping inputs + temporaries inside the budget.

    Per logit element: ~2 double-buffered native input copies + ~3 live f32
    temporaries inside the body.
    """
    bytes_per_row = (2 * itemsize + 12) * max(int(n_cols), 1)
    tn = min(int(budget_bytes // bytes_per_row), int(row_cap))
    if tn >= n_rows:
        return int(n_rows)                       # full dim block (always legal)
    sub = max(8, 32 // max(int(itemsize), 1))    # dtype-native sublane multiple
    tn = max(sub, (tn // sub) * sub)
    if tn >= n_rows:
        return int(n_rows)
    return int(tn)


def _pick_col_tile(n_cols, cap):
    """Largest lane-dense column tile <= cap that divides C (None if none)."""
    for d in (2048, 1536, 1024, 768, 512, 384, 256, 128):
        if d <= cap and d < n_cols and n_cols % d == 0:
            return d
    return None


# ---------------------------------------------------------------------------
# pallas_call wrappers
# ---------------------------------------------------------------------------
def _ce_rowblock_call(pred, target2d, N, C, tn, vmem_limit):
    grid = pl.cdiv(N, tn)
    kernel = functools.partial(_ce_rowblock_kernel, n_valid=N)
    return pl.pallas_call(
        kernel,
        out_shape=jax.ShapeDtypeStruct((grid, 1), jnp.float32),
        grid_spec=pltpu.PrefetchScalarGridSpec(
            num_scalar_prefetch=0,
            grid=(grid,),
            in_specs=[
                pl.BlockSpec((tn, C), lambda i: (i, 0)),
                pl.BlockSpec((tn, 1), lambda i: (i, 0)),
            ],
            out_specs=pl.BlockSpec((1, 1), lambda i: (i, 0),
                                   memory_space=pltpu.SMEM),
        ),
        compiler_params=pltpu.CompilerParams(
            dimension_semantics=("parallel",),
            vmem_limit_bytes=vmem_limit,
        ),
    )(pred, target2d)


def _ce_coltiled_call(pred, target2d, N, C, tc, itemsize, budget, vmem_limit,
                      row_cap):
    tn = _pick_block_rows(N, tc, itemsize, budget, row_cap)
    row_grid = pl.cdiv(N, tn)
    col_grid = C // tc
    kernel = functools.partial(_ce_colblock_kernel, n_valid=N)
    return pl.pallas_call(
        kernel,
        out_shape=jax.ShapeDtypeStruct((row_grid, 1), jnp.float32),
        grid_spec=pltpu.PrefetchScalarGridSpec(
            num_scalar_prefetch=0,
            grid=(row_grid, col_grid),
            in_specs=[
                pl.BlockSpec((tn, tc), lambda i, j: (i, j)),
                pl.BlockSpec((tn, 1), lambda i, j: (i, 0)),
            ],
            out_specs=pl.BlockSpec((1, 1), lambda i, j: (i, 0),
                                   memory_space=pltpu.SMEM),
            scratch_shapes=[
                pltpu.VMEM((tn, 1), jnp.float32),   # running max m
                pltpu.VMEM((tn, 1), jnp.float32),   # running sum-exp l
                pltpu.VMEM((tn, 1), jnp.float32),   # picked target logit
            ],
        ),
        compiler_params=pltpu.CompilerParams(
            dimension_semantics=("parallel", "arbitrary"),
            vmem_limit_bytes=vmem_limit,
        ),
    )(pred, target2d)


def cross_entropy_loss(pred, target, loss_weight=1.0, *,
                       max_block_rows=None, max_block_classes=None):
    """Pallas equivalent of the PyTorch CrossEntropyLoss.forward (mean reduction).

    max_block_rows / max_block_classes are optional tuning/test overrides that cap
    the row tile and force the column-tiled online-LSE path respectively.
    """
    N, C = pred.shape
    target2d = target.reshape(-1).astype(jnp.int32).reshape(N, 1)
    itemsize = jnp.dtype(pred.dtype).itemsize

    budget, vmem_limit = _vmem_budgets()
    row_cap = 2048 if max_block_rows is None else min(2048, int(max_block_rows))

    tn_single = _pick_block_rows(N, C, itemsize, budget, row_cap)

    # Column-tiled online-LSE path for vocab-scale C (or when forced for tests).
    col_cap = 2048 if max_block_classes is None else int(max_block_classes)
    want_col = (C > col_cap) and (max_block_classes is not None
                                  or (C > 8192 and tn_single < 512))
    tc = _pick_col_tile(C, col_cap) if want_col else None

    if tc is not None:
        partials = _ce_coltiled_call(pred, target2d, N, C, tc, itemsize,
                                     budget, vmem_limit, row_cap)
    else:
        partials = _ce_rowblock_call(pred, target2d, N, C, tn_single, vmem_limit)

    loss = jnp.sum(partials) * (jnp.float32(loss_weight) / jnp.float32(N))
    return {"loss_cls": loss}


# ---------------------------------------------------------------------------
# Pure-JAX reference (matches PyTorch: pred.float(); F.cross_entropy mean)
# ---------------------------------------------------------------------------
def _reference(pred, target, loss_weight=1.0):
    pred = pred.astype(jnp.float32)
    target = target.reshape(-1).astype(jnp.int32)
    logp = jax.nn.log_softmax(pred, axis=-1)
    nll = -jnp.take_along_axis(logp, target[:, None], axis=-1)[:, 0]
    return jnp.mean(nll) * loss_weight


if __name__ == "__main__":
    key = jax.random.PRNGKey(0)
    k1, k2, k3, k4, k5, k6, k7, k8 = jax.random.split(key, 8)

    # 1) Small f32, single row block: 8 samples, 32 classes.
    N, C = 8, 32
    pred = jax.random.normal(k1, (N, C), dtype=jnp.float32)
    target = jax.random.randint(k2, (N,), 0, C, dtype=jnp.int32)
    out = cross_entropy_loss(pred, target, loss_weight=1.0)
    loss = jax.block_until_ready(out["loss_cls"])
    ref = jax.block_until_ready(_reference(pred, target, loss_weight=1.0))
    assert jnp.allclose(loss, ref, rtol=1e-5, atol=1e-5), (loss, ref)

    # 2) bf16 native-dtype path (no wrapper cast): 16 samples, 128 classes.
    N2, C2 = 16, 128
    pred_bf16 = jax.random.normal(k3, (N2, C2), dtype=jnp.bfloat16)
    target2 = jax.random.randint(k4, (N2,), 0, C2, dtype=jnp.int32)
    out2 = cross_entropy_loss(pred_bf16, target2, loss_weight=0.5)
    loss2 = jax.block_until_ready(out2["loss_cls"])
    ref2 = jax.block_until_ready(_reference(pred_bf16, target2, loss_weight=0.5))
    assert jnp.allclose(loss2, ref2, rtol=1e-4, atol=1e-5), (loss2, ref2)

    # 3) Multi-row-block path with a partial last block (tail-row mask).
    N3, C3 = 20, 256
    pred3 = jax.random.normal(k5, (N3, C3), dtype=jnp.float32)
    target3 = jax.random.randint(k6, (N3,), 0, C3, dtype=jnp.int32)
    out3 = cross_entropy_loss(pred3, target3, loss_weight=1.0, max_block_rows=16)
    loss3 = jax.block_until_ready(out3["loss_cls"])
    ref3 = jax.block_until_ready(_reference(pred3, target3, loss_weight=1.0))
    assert jnp.allclose(loss3, ref3, rtol=1e-5, atol=1e-5), (loss3, ref3)

    # 4) Column-tiled online-LSE path (forced small for the test): 70 x 512,
    #    row tile 32 (partial last row block), column tile 128 (4 column blocks).
    N4, C4 = 70, 512
    pred4 = jax.random.normal(k7, (N4, C4), dtype=jnp.float32)
    target4 = jax.random.randint(k8, (N4,), 0, C4, dtype=jnp.int32)
    out4 = cross_entropy_loss(pred4, target4, loss_weight=2.0,
                              max_block_rows=32, max_block_classes=128)
    loss4 = jax.block_until_ready(out4["loss_cls"])
    ref4 = jax.block_until_ready(_reference(pred4, target4, loss_weight=2.0))
    assert jnp.allclose(loss4, ref4, rtol=1e-5, atol=1e-5), (loss4, ref4)

    print("KERNEL_OK")
</pallas_src>

<mosaic_0001>
module attributes {stable_mosaic.version = 11 : i64} {
  func.func @_ce_rowblock_kernel(%arg0: i32, %arg1: memref<8x32xf32, #tpu.memory_space<vmem>>, %arg2: memref<8x1xi32, #tpu.memory_space<vmem>>, %arg3: memref<1x1xf32, #tpu.memory_space<smem>>) attributes {dimension_semantics = [#tpu.dimension_semantics<parallel>], iteration_bounds = array<i64: 1>, scalar_prefetch = 0 : i64, scratch_operands = 0 : i64, tpu.core_type = #tpu.core_type<tc>, window_params = [{transform_indices = @transform_0, window_bounds = array<i64: 8, 32>}, {transform_indices = @transform_1, window_bounds = array<i64: 8, 1>}, {transform_indices = @transform_2, window_bounds = array<i64: 1, 1>}]} {
    %c0 = arith.constant 0 : index
    %c0_0 = arith.constant 0 : index
    %0 = vector.load %arg1[%c0, %c0_0] : memref<8x32xf32, #tpu.memory_space<vmem>>, vector<8x32xf32>
    %c0_1 = arith.constant 0 : index
    %c0_2 = arith.constant 0 : index
    %1 = vector.load %arg2[%c0_1, %c0_2] : memref<8x1xi32, #tpu.memory_space<vmem>>, vector<8x1xi32>
    %cst = arith.constant dense<0xFF800000> : vector<8xf32>
    %2 = vector.multi_reduction <maximumf>, %0, %cst [1] : vector<8x32xf32> to vector<8xf32>
    %3 = vector.shape_cast %2 : vector<8xf32> to vector<8x1xf32>
    %4 = vector.broadcast %3 : vector<8x1xf32> to vector<8x32xf32>
    %5 = arith.subf %0, %4 : vector<8x32xf32>
    %6 = math.exp %5 : vector<8x32xf32>
    %cst_3 = arith.constant dense<0.000000e+00> : vector<8xf32>
    %7 = vector.multi_reduction <add>, %6, %cst_3 [1] : vector<8x32xf32> to vector<8xf32>
    %8 = vector.shape_cast %7 : vector<8xf32> to vector<8x1xf32>
    %9 = math.log %8 : vector<8x1xf32>
    %10 = arith.addf %3, %9 : vector<8x1xf32>
    %11 = tpu.iota {dimensions = array<i32: 1>} : vector<8x32xi32>
    %12 = vector.broadcast %1 : vector<8x1xi32> to vector<8x32xi32>
    %13 = arith.cmpi eq, %11, %12 : vector<8x32xi32>
    %cst_4 = arith.constant 0.000000e+00 : f32
    %14 = vector.broadcast %cst_4 : f32 to vector<8x32xf32>
    %15 = arith.select %13, %0, %14 : vector<8x32xi1>, vector<8x32xf32>
    %cst_5 = arith.constant dense<0.000000e+00> : vector<8xf32>
    %16 = vector.multi_reduction <add>, %15, %cst_5 [1] : vector<8x32xf32> to vector<8xf32>
    %17 = vector.shape_cast %16 : vector<8xf32> to vector<8x1xf32>
    %18 = arith.subf %10, %17 : vector<8x1xf32>
    %c0_i32 = arith.constant 0 : i32
    %19 = arith.cmpi ne, %arg0, %c0_i32 : i32
    %20 = arith.extui %19 : i1 to i32
    %c0_i32_6 = arith.constant 0 : i32
    %21 = arith.cmpi ne, %20, %c0_i32_6 : i32
    scf.if %21 {
      %25 = vector.shape_cast %18 : vector<8x1xf32> to vector<1x8x1xf32>
      %cst_9 = arith.constant dense<0.000000e+00> : vector<1xf32>
      %26 = vector.multi_reduction <add>, %25, %cst_9 [1, 2] : vector<1x8x1xf32> to vector<1xf32>
      %27 = vector.shape_cast %26 : vector<1xf32> to vector<1x1x1xf32>
      %28 = vector.extract %27[0, 0, 0] : f32 from vector<1x1x1xf32>
      %c0_10 = arith.constant 0 : index
      %c0_11 = arith.constant 0 : index
      %29 = memref.load %arg3[%c0_10, %c0_11] : memref<1x1xf32, #tpu.memory_space<smem>>
      memref.store %28, %arg3[%c0_10, %c0_11] : memref<1x1xf32, #tpu.memory_space<smem>>
    } else {
    }
    %c0_i32_7 = arith.constant 0 : i32
    %22 = arith.cmpi eq, %arg0, %c0_i32_7 : i32
    %23 = arith.extui %22 : i1 to i32
    %c0_i32_8 = arith.constant 0 : i32
    %24 = arith.cmpi ne, %23, %c0_i32_8 : i32
    scf.if %24 {
      %c8_i32 = arith.constant 8 : i32
      %25 = arith.muli %arg0, %c8_i32 : i32
      %26 = tpu.iota {dimensions = array<i32: 0>} : vector<8x1xi32>
      %27 = vector.broadcast %25 : i32 to vector<8x1xi32>
      %28 = arith.addi %27, %26 : vector<8x1xi32>
      %c8_i32_9 = arith.constant 8 : i32
      %29 = vector.broadcast %c8_i32_9 : i32 to vector<8x1xi32>
      %30 = arith.cmpi slt, %28, %29 : vector<8x1xi32>
      %cst_10 = arith.constant 0.000000e+00 : f32
      %31 = vector.broadcast %cst_10 : f32 to vector<8x1xf32>
      %32 = arith.select %30, %18, %31 : vector<8x1xi1>, vector<8x1xf32>
      %33 = vector.shape_cast %32 : vector<8x1xf32> to vector<1x8x1xf32>
      %cst_11 = arith.constant dense<0.000000e+00> : vector<1xf32>
      %34 = vector.multi_reduction <add>, %33, %cst_11 [1, 2] : vector<1x8x1xf32> to vector<1xf32>
      %35 = vector.shape_cast %34 : vector<1xf32> to vector<1x1x1xf32>
      %36 = vector.extract %35[0, 0, 0] : f32 from vector<1x1x1xf32>
      %c0_12 = arith.constant 0 : index
      %c0_13 = arith.constant 0 : index
      %37 = memref.load %arg3[%c0_12, %c0_13] : memref<1x1xf32, #tpu.memory_space<smem>>
      memref.store %36, %arg3[%c0_12, %c0_13] : memref<1x1xf32, #tpu.memory_space<smem>>
    } else {
    }
    return
  }
  func.func @transform_0(%arg0: i32) -> (i32, i32) {
    %c0_i32 = arith.constant 0 : i32
    %c0_i32_0 = arith.constant 0 : i32
    return %arg0, %c0_i32 : i32, i32
  }
  func.func @transform_1(%arg0: i32) -> (i32, i32) {
    %c0_i32 = arith.constant 0 : i32
    %c0_i32_0 = arith.constant 0 : i32
    return %arg0, %c0_i32 : i32, i32
  }
  func.func @transform_2(%arg0: i32) -> (i32, i32) {
    %c0_i32 = arith.constant 0 : i32
    %c0_i32_0 = arith.constant 0 : i32
    return %arg0, %c0_i32 : i32, i32
  }
}

</mosaic_0001>

<llo_original>
// kernel: tpu_custom_call.1
$region0: #{tpu_custom_call.1}
  #allocation0 [shape = 'u32[]', space=smem, size = 0x4, offset = 0x4, fixed_abs, tag = 'smem constant byte address 0x4 - core index']
  #allocation1 [shape = 'u32[144,128]{1,0:T(1,128)}', space=vmem, size = 0x12000, scoped, tag = 'internal scratch']
  %s0 = inlined_call_operand.vmem [shape: f32[8,32], index: 0, kind: input, shape index: {}]
  %s1 = inlined_call_operand.vmem [shape: s32[8,1], index: 1, kind: input, shape index: {}]
  %s2 = inlined_call_operand.hbm [shape: f32[1,1], index: 2, kind: output, shape index: {}]
  %s3 = sld [smem:[#allocation0]]
  $region26: #{tpu_custom_call.1} parent=0
    _
  %s5 = ssub.s32 1, %s3
  %s6 = scalar_select 0, %s5, %s3
  $region1: #{tpu_custom_call.1} parent=0
    #allocation2 [shape = 'u8[512]{0}', space=smem, size = 0x200, scoped, tag = 'output window, operand 0, single buffered']
    #allocation3 [shape = 's32[1]{0}', space=sflag, size = 0x4, scoped, tag = 'scoped memory for tpu_custom_call.1']
    %7 = vsyncpa [#allocation3], 0
    // Predicated region
    $region2: #{tpu_custom_call.1} parent=1 // pred_check
      _
    $region3: #{tpu_custom_call.1} parent=1 // pred_check_branch
      %9 = sbr.rel (0) target = $region5
    $region4: #{tpu_custom_call.1} parent=1 // pred_region
      _
    $region5: #{tpu_custom_call.1} parent=1 // pred_fallthru
      _
    // Predicated region
    $region6: #{tpu_custom_call.1} parent=1 // pred_check
      _
    $region7: #{tpu_custom_call.1} parent=1 // pred_check_branch
      %11 = sbr.rel (0) target = $region9
    $region8: #{tpu_custom_call.1} parent=1 // pred_region
      _
    $region9: #{tpu_custom_call.1} parent=1 // pred_fallthru
      _
    %v12 = vld [vmem:[%s0] sm:$0xff]
    %v13 = vld [vmem:[%s1] sm:$0xff]
    %vm14 = vcmask 261120
    %v15 = vsel %vm14, %v12, -inf
    %16 = vmax.xlane.f32.xlu0 %v15
    %v17 = vpop.xlane.xlu0 %16
    %v18 = vsub.f32 %v12, %v17
    %v19 = vmul.f32 %v18, 1.442695
    %v20 = vpow.pop %v19
    %v21 = vsel %vm14, %v20, 0.0
    %22 = vadd.xlane.f32.xlu0 %v21
    %v23 = vpop.xlane.xlu0 %22
    %v24 = vlog2.pop %v23
    %v25 = vmul.f32 %v24, 0.6931472
    %v26 = vadd.f32 %v17, %v25
    %v27 = vlaneseq
    %v28 = vand.u32 %v27, 127
    %29 = vset.pattern.permute.xlu0 0
    %30 = vperm.xlu0 %29, %v13
    %v31 = vpop.permute.xlu0 %30
    %vm32 = vcmp.eq.s32.totalorder %v28, %v31
    %v33 = vsel %vm32, %v12, 0.0
    %v34 = vsel %vm14, %v33, 0.0
    %35 = vadd.xlane.f32.xlu0 %v34
    %v36 = vpop.xlane.xlu0 %35
    %v37 = vsub.f32 %v26, %v36
    %p38 = scmp.ne.s32.totalorder 0, 0
    // Predicated region
    $region10: #{tpu_custom_call.1} parent=1 // pred_check
      %p39 = pneg %p38
    $region11: #{tpu_custom_call.1} parent=1 // pred_check_branch
      %41 = sbr.rel (%p39) target = $region13
    $region12: #{tpu_custom_call.1} parent=1 // pred_region
      %vm42 = vcmask 7168
      %v43 = vsel %vm42, %v37, 0.0
      %44 = vadd.xlane.f32.xlu0 %v43
      %v45 = vpop.xlane.xlu0 %44
      %v46 = vrot.slane %v45, 4
      %v47 = vadd.f32 %v45, %v46
      %v48 = vrot.slane %v47, 2
      %v49 = vadd.f32 %v47, %v48
      %v50 = vrot.slane %v49, 1
      %v51 = vadd.f32 %v49, %v50
      %s52 = vtos %v51
      %s53 = scalar_lea.smem [#allocation2], 0
      %54 = sst [smem:[%s53]] %s52
    $region13: #{tpu_custom_call.1} parent=1 // pred_fallthru
      _
    %p55 = scmp.eq.s32.totalorder 0, 0
    // Predicated region
    $region14: #{tpu_custom_call.1} parent=1 // pred_check
      %p56 = pneg %p55
    $region15: #{tpu_custom_call.1} parent=1 // pred_check_branch
      %58 = sbr.rel (%p56) target = $region17
    $region16: #{tpu_custom_call.1} parent=1 // pred_region
      %s59 = smul.u32 0, 8
      %v60 = vlaneseq
      %v61 = vshrl.u32 %v60, 7
      %v62 = vstv %s59
      %v63 = vadd.s32 %v62, %v61
      %vm64 = vcmp.lt.s32.totalorder %v63, 8
      %v65 = vsel %vm64, %v37, 0.0
      %vm66 = vcmask 7168
      %v67 = vsel %vm66, %v65, 0.0
      %68 = vadd.xlane.f32.xlu0 %v67
      %v69 = vpop.xlane.xlu0 %68
      %v70 = vrot.slane %v69, 4
      %v71 = vadd.f32 %v69, %v70
      %v72 = vrot.slane %v71, 2
      %v73 = vadd.f32 %v71, %v72
      %v74 = vrot.slane %v73, 1
      %v75 = vadd.f32 %v73, %v74
      %s76 = vtos %v75
      %s77 = scalar_lea.smem [#allocation2], 0
      %78 = sst [smem:[%s77]] %s76
    $region17: #{tpu_custom_call.1} parent=1 // pred_fallthru
      _
    // Predicated region
    $region18: #{tpu_custom_call.1} parent=1 // pred_check
      _
    $region19: #{tpu_custom_call.1} parent=1 // pred_check_branch
      %80 = sbr.rel (0) target = $region21
    $region20: #{tpu_custom_call.1} parent=1 // pred_region
      %s82 = ssub.s32 16, 16
      %83 = vsyncadd [#allocation3], %s82
      %86 = dma.smem_to_hbm [#allocation2], 16, %s2, [#allocation3]
    $region21: #{tpu_custom_call.1} parent=1 // pred_fallthru
      _
    // Predicated region
    $region22: #{tpu_custom_call.1} parent=1 // pred_check
      _
    $region23: #{tpu_custom_call.1} parent=1 // pred_check_branch
      %88 = sbr.rel (0) target = $region25
    $region24: #{tpu_custom_call.1} parent=1 // pred_region
      %89 = dma.done [#allocation3], 16
    $region25: #{tpu_custom_call.1} parent=1 // pred_fallthru
      _
    %90 = sfence
    %91 = vsyncpa [#allocation3], 1

</llo_original>
